<compile_context>
chip_gen: v7x
topology: tpu7x:2x2x1
jax: 0.10.0
libtpu: 0.0.40
codegen_flags: <defaults>
</compile_context>

<pallas_src>
from dataclasses import dataclass

import jax
import jax.numpy as jnp
from jax.experimental import pallas as pl
from jax.experimental.pallas import tpu as pltpu


@dataclass
class PotentialOutput:
    energies: jnp.ndarray = None
    forces: jnp.ndarray = None
    energies_decomposed: jnp.ndarray = None
    forces_decomposed: jnp.ndarray = None


def _potential_kernel(x_ref, cflat_ref, kflat_ref, nk_ref, kc_ref, ksel_ref,
                      ed_ref, f_ref, fd_ref):
    """One batch tile of the harmonic potential.

    x     : (TB, D)    positions tile
    cflat : (1, T*D)   term centers, flattened lane-dense
    kflat : (1, T*D)   per-term stiffness broadcast over D, flattened
    nk    : (1, D)     -(sum_t k_t) broadcast row
    kc    : (1, D)     sum_t k_t * c_t
    ksel  : (T*D, T)   0.5*k[t] selection matrix for the per-term reduction
    ed    : (TB, T)    energies_decomposed
    f     : (TB, D)    total conservative forces
    fd    : (TB, T*D)  forces_decomposed, lane-dense (reshaped in the wrapper)
    """
    x = x_ref[...]                                   # (TB, D) f32
    n_terms = ksel_ref.shape[1]

    # Lane-dense tiled positions (TB, T*D): lane concatenation, no reshape.
    x_tiled = jnp.concatenate([x] * n_terms, axis=1)
    diff = x_tiled - cflat_ref[...]                  # (TB, T*D)

    # forces_decomposed: store immediately so its live range ends here.
    fd_ref[...] = (-(kflat_ref[...] * diff)).astype(fd_ref.dtype)

    # energies_decomposed: ed[b,t] = 0.5*k[t]*sum_d diff[b, t*D+d]^2
    # done as an MXU matmul against the small (T*D, T) selection matrix.
    sq = diff * diff
    ed_ref[...] = jnp.dot(
        sq, ksel_ref[...],
        precision=jax.lax.Precision.HIGHEST,
        preferred_element_type=jnp.float32,
    ).astype(ed_ref.dtype)

    # total conservative force (analytic): f = -(sum_t k_t)*x + sum_t k_t*c_t
    f_ref[...] = (nk_ref[...] * x + kc_ref[...]).astype(f_ref.dtype)


def _round_up(x, m):
    return ((x + m - 1) // m) * m


def _tpu_vmem_bytes():
    try:
        return int(pltpu.get_tpu_info().vmem_capacity_bytes)
    except Exception:
        return 64 * 1024 * 1024  # conservative v7x-sized fallback


def _choose_batch_tile(B, T, D, budget_bytes):
    """VMEM-budget-driven batch tile (multiple of 8; ragged last block OK)."""
    TD = T * D
    # Grid-invariant constant inputs (cflat, kflat, nk, kc, ksel), x2 buffering.
    const_bytes = 4 * 2 * (2 * TD + 2 * D + TD * T)
    avail = max(budget_bytes - const_bytes, 1 << 20)
    # Per-batch-row bytes: double-buffered in/out blocks + ~3 (T*D) f32 temps.
    per_row = 4 * (2 * (2 * D + T + TD) + 3 * TD)
    tb = avail // max(per_row, 1)
    tb = max(8, min(2048, (tb // 8) * 8))
    if tb >= B:
        tb = B                       # single full-batch block (always legal)
    if B >= 16:
        # Keep >= 2 grid blocks: pipelining amortization + v7x megacore split.
        half = max(8, _round_up((B + 1) // 2, 8))
        tb = min(tb, half)
    return tb


@jax.jit
def _potential_forward(positions, centers, stiffness):
    """positions (B, D) f32, centers (T, D) f32, stiffness (T,) f32."""
    B, D = positions.shape
    T = centers.shape[0]
    TD = T * D
    f32 = jnp.float32

    # Grid-invariant hoisted reductions / lane-dense layout prep (tiny, XLA-fused).
    k_col = stiffness.reshape(T, 1)
    cflat = centers.reshape(1, TD)                                     # (1, T*D)
    kflat = jnp.broadcast_to(k_col, (T, D)).reshape(1, TD)             # (1, T*D)
    nk_row = jnp.broadcast_to(-jnp.sum(stiffness), (1, D)).astype(f32)  # (1, D)
    kc = jnp.sum(k_col * centers, axis=0, keepdims=True).astype(f32)   # (1, D)
    ksel = jnp.repeat(jnp.diag(0.5 * stiffness), D, axis=0).astype(f32)  # (T*D, T)

    vmem_cap = _tpu_vmem_bytes()
    TB = _choose_batch_tile(B, T, D, int(vmem_cap * 0.4))
    n_blocks = pl.cdiv(B, TB)

    out_shapes = (
        jax.ShapeDtypeStruct((B, T), f32),      # energies_decomposed
        jax.ShapeDtypeStruct((B, D), f32),      # forces
        jax.ShapeDtypeStruct((B, TD), f32),     # forces_decomposed (lane-dense)
    )
    ed, f, fd_flat = pl.pallas_call(
        _potential_kernel,
        out_shape=out_shapes,
        grid=(n_blocks,),
        in_specs=[
            pl.BlockSpec((TB, D), lambda i: (i, 0)),     # positions tile
            pl.BlockSpec((1, TD), lambda i: (0, 0)),     # cflat (replicated)
            pl.BlockSpec((1, TD), lambda i: (0, 0)),     # kflat (replicated)
            pl.BlockSpec((1, D), lambda i: (0, 0)),      # -sum_t k_t row
            pl.BlockSpec((1, D), lambda i: (0, 0)),      # sum_t k_t*c_t
            pl.BlockSpec((TD, T), lambda i: (0, 0)),     # 0.5*k selection matrix
        ],
        out_specs=[
            pl.BlockSpec((TB, T), lambda i: (i, 0)),
            pl.BlockSpec((TB, D), lambda i: (i, 0)),
            pl.BlockSpec((TB, TD), lambda i: (i, 0)),
        ],
        compiler_params=pltpu.CompilerParams(
            dimension_semantics=("parallel",),
            vmem_limit_bytes=int(vmem_cap * 0.7),
        ),
    )(positions, cflat, kflat, nk_row, kc, ksel)

    # Total energy: sum over terms (cheap, fused by XLA inside this jit).
    e = jnp.sum(ed, axis=-1, keepdims=True)
    fd = fd_flat.reshape(B, T, D)                # free metadata reshape
    return e, ed, f, fd


class BasePotentialPallas:
    """Pallas-backed stand-in for popcornn BasePotential with a harmonic form."""

    def __init__(self, n_dof, n_terms, dtype=jnp.float32,
                 add_azimuthal_dof=False, add_translation_dof=False):
        self.dtype = dtype
        self.point_option = 0
        self.point_arg = 0
        if add_azimuthal_dof:
            self.point_option = 1
            self.point_arg = add_azimuthal_dof
        elif add_translation_dof:
            self.point_option = 2
        # Deterministic synthetic parameters (no checkpoint load).
        # TODO(synk): BasePotential.forward has no concrete energy function;
        #             a synthetic harmonic potential stands in for it.
        kc_key, kk_key = jax.random.split(jax.random.PRNGKey(42))
        self.centers = jax.random.normal(kc_key, (n_terms, n_dof), dtype=jnp.float32)
        self.stiffness = 0.5 + jax.random.uniform(kk_key, (n_terms,), dtype=jnp.float32)

    def forward(self, positions: jnp.ndarray) -> PotentialOutput:
        e, ed, f, fd = _potential_forward(
            positions.astype(jnp.float32), self.centers, self.stiffness)
        return PotentialOutput(energies=e, forces=f,
                               energies_decomposed=ed, forces_decomposed=fd)

    __call__ = forward


def _reference(positions, centers, stiffness):
    diff = positions[:, None, :] - centers[None, :, :]            # (B, T, D)
    ed = 0.5 * stiffness[None, :] * jnp.sum(diff * diff, -1)      # (B, T)
    e = jnp.sum(ed, -1, keepdims=True)                            # (B, 1)
    fd = -stiffness[None, :, None] * diff                         # (B, T, D)
    f = jnp.sum(fd, axis=1)                                       # (B, D)
    return e, ed, f, fd


def _check(pot, positions):
    out = pot(positions)
    jax.block_until_ready(out.energies)
    jax.block_until_ready(out.forces)
    jax.block_until_ready(out.energies_decomposed)
    jax.block_until_ready(out.forces_decomposed)
    e_ref, ed_ref, f_ref, fd_ref = _reference(positions, pot.centers, pot.stiffness)
    assert jnp.allclose(out.energies, e_ref, atol=1e-4, rtol=1e-4)
    assert jnp.allclose(out.energies_decomposed, ed_ref, atol=1e-4, rtol=1e-4)
    assert jnp.allclose(out.forces, f_ref, atol=1e-4, rtol=1e-4)
    assert jnp.allclose(out.forces_decomposed, fd_ref, atol=1e-4, rtol=1e-4)


if __name__ == "__main__":
    n_dof, n_terms = 16, 4
    pot = BasePotentialPallas(n_dof=n_dof, n_terms=n_terms)

    # Small batch, single grid block.
    key0 = jax.random.PRNGKey(0)
    positions_small = jax.random.normal(key0, (8, n_dof), dtype=jnp.float32)
    _check(pot, positions_small)

    # Larger, non-divisible batch: exercises cdiv grid + ragged last block
    # and the >= 2-block rule (multi-block pipelined grid).
    key1 = jax.random.PRNGKey(1)
    positions_ragged = jax.random.normal(key1, (20, n_dof), dtype=jnp.float32)
    _check(pot, positions_ragged)

    print("KERNEL_OK")
</pallas_src>

<mosaic_0001>
module attributes {stable_mosaic.version = 11 : i64} {
  func.func @_potential_kernel(%arg0: i32, %arg1: memref<8x16xf32, #tpu.memory_space<vmem>>, %arg2: memref<1x64xf32, #tpu.memory_space<vmem>>, %arg3: memref<1x64xf32, #tpu.memory_space<vmem>>, %arg4: memref<1x16xf32, #tpu.memory_space<vmem>>, %arg5: memref<1x16xf32, #tpu.memory_space<vmem>>, %arg6: memref<64x4xf32, #tpu.memory_space<vmem>>, %arg7: memref<8x4xf32, #tpu.memory_space<vmem>>, %arg8: memref<8x16xf32, #tpu.memory_space<vmem>>, %arg9: memref<8x64xf32, #tpu.memory_space<vmem>>) attributes {dimension_semantics = [#tpu.dimension_semantics<parallel>], iteration_bounds = array<i64: 1>, scalar_prefetch = 0 : i64, scratch_operands = 0 : i64, tpu.core_type = #tpu.core_type<tc>, window_params = [{transform_indices = @transform_0, window_bounds = array<i64: 8, 16>}, {pipeline_mode = #tpu.pipeline_mode<synchronous>, transform_indices = @transform_1, window_bounds = array<i64: 1, 64>}, {pipeline_mode = #tpu.pipeline_mode<synchronous>, transform_indices = @transform_2, window_bounds = array<i64: 1, 64>}, {pipeline_mode = #tpu.pipeline_mode<synchronous>, transform_indices = @transform_3, window_bounds = array<i64: 1, 16>}, {pipeline_mode = #tpu.pipeline_mode<synchronous>, transform_indices = @transform_4, window_bounds = array<i64: 1, 16>}, {pipeline_mode = #tpu.pipeline_mode<synchronous>, transform_indices = @transform_5, window_bounds = array<i64: 64, 4>}, {transform_indices = @transform_6, window_bounds = array<i64: 8, 4>}, {transform_indices = @transform_7, window_bounds = array<i64: 8, 16>}, {transform_indices = @transform_8, window_bounds = array<i64: 8, 64>}]} {
    %c0 = arith.constant 0 : index
    %c0_0 = arith.constant 0 : index
    %0 = vector.load %arg1[%c0, %c0_0] : memref<8x16xf32, #tpu.memory_space<vmem>>, vector<8x16xf32>
    %1 = tpu.concatenate %0, %0, %0, %0 in 1 : vector<8x16xf32>, vector<8x16xf32>, vector<8x16xf32>, vector<8x16xf32> -> vector<8x64xf32>
    %c0_1 = arith.constant 0 : index
    %c0_2 = arith.constant 0 : index
    %2 = vector.load %arg2[%c0_1, %c0_2] : memref<1x64xf32, #tpu.memory_space<vmem>>, vector<1x64xf32>
    %3 = vector.broadcast %2 : vector<1x64xf32> to vector<8x64xf32>
    %4 = arith.subf %1, %3 : vector<8x64xf32>
    %c0_3 = arith.constant 0 : index
    %c0_4 = arith.constant 0 : index
    %5 = vector.load %arg3[%c0_3, %c0_4] : memref<1x64xf32, #tpu.memory_space<vmem>>, vector<1x64xf32>
    %6 = vector.broadcast %5 : vector<1x64xf32> to vector<8x64xf32>
    %7 = arith.mulf %6, %4 : vector<8x64xf32>
    %cst = arith.constant 0.000000e+00 : f32
    %8 = vector.broadcast %cst : f32 to vector<8x64xf32>
    %9 = arith.subf %8, %7 : vector<8x64xf32>
    %c0_5 = arith.constant 0 : index
    %c0_6 = arith.constant 0 : index
    %10 = vector.load %arg9[%c0_5, %c0_6] : memref<8x64xf32, #tpu.memory_space<vmem>>, vector<8x64xf32>
    tpu.vector_store %arg9[%c0_5, %c0_6], %9 {strides = array<i32>} : memref<8x64xf32, #tpu.memory_space<vmem>>, vector<8x64xf32>,
    %11 = arith.mulf %4, %4 : vector<8x64xf32>
    %c0_7 = arith.constant 0 : index
    %c0_8 = arith.constant 0 : index
    %12 = vector.load %arg6[%c0_7, %c0_8] : memref<64x4xf32, #tpu.memory_space<vmem>>, vector<64x4xf32>
    %cst_9 = arith.constant dense<0.000000e+00> : vector<8x4xf32>
    %13 = tpu.matmul %11, %12, %cst_9 {dimension_numbers = #tpu.dot_dimension_numbers<[1], [0], [0], [1], [0, 0, 1, 1], [], []>, precision = #tpu.contract_precision<fp32>} : vector<8x64xf32>, vector<64x4xf32>, vector<8x4xf32> -> vector<8x4xf32>
    %c0_10 = arith.constant 0 : index
    %c0_11 = arith.constant 0 : index
    %14 = vector.load %arg7[%c0_10, %c0_11] : memref<8x4xf32, #tpu.memory_space<vmem>>, vector<8x4xf32>
    tpu.vector_store %arg7[%c0_10, %c0_11], %13 {strides = array<i32>} : memref<8x4xf32, #tpu.memory_space<vmem>>, vector<8x4xf32>,
    %c0_12 = arith.constant 0 : index
    %c0_13 = arith.constant 0 : index
    %15 = vector.load %arg4[%c0_12, %c0_13] : memref<1x16xf32, #tpu.memory_space<vmem>>, vector<1x16xf32>
    %16 = vector.broadcast %15 : vector<1x16xf32> to vector<8x16xf32>
    %17 = arith.mulf %16, %0 : vector<8x16xf32>
    %c0_14 = arith.constant 0 : index
    %c0_15 = arith.constant 0 : index
    %18 = vector.load %arg5[%c0_14, %c0_15] : memref<1x16xf32, #tpu.memory_space<vmem>>, vector<1x16xf32>
    %19 = vector.broadcast %18 : vector<1x16xf32> to vector<8x16xf32>
    %20 = arith.addf %17, %19 : vector<8x16xf32>
    %c0_16 = arith.constant 0 : index
    %c0_17 = arith.constant 0 : index
    %21 = vector.load %arg8[%c0_16, %c0_17] : memref<8x16xf32, #tpu.memory_space<vmem>>, vector<8x16xf32>
    tpu.vector_store %arg8[%c0_16, %c0_17], %20 {strides = array<i32>} : memref<8x16xf32, #tpu.memory_space<vmem>>, vector<8x16xf32>,
    return
  }
  func.func @transform_0(%arg0: i32) -> (i32, i32) {
    %c0_i32 = arith.constant 0 : i32
    %c0_i32_0 = arith.constant 0 : i32
    return %arg0, %c0_i32 : i32, i32
  }
  func.func @transform_1(%arg0: i32) -> (i32, i32) {
    %c0_i32 = arith.constant 0 : i32
    %c0_i32_0 = arith.constant 0 : i32
    %c0_i32_1 = arith.constant 0 : i32
    return %c0_i32, %c0_i32_0 : i32, i32
  }
  func.func @transform_2(%arg0: i32) -> (i32, i32) {
    %c0_i32 = arith.constant 0 : i32
    %c0_i32_0 = arith.constant 0 : i32
    %c0_i32_1 = arith.constant 0 : i32
    return %c0_i32, %c0_i32_0 : i32, i32
  }
  func.func @transform_3(%arg0: i32) -> (i32, i32) {
    %c0_i32 = arith.constant 0 : i32
    %c0_i32_0 = arith.constant 0 : i32
    %c0_i32_1 = arith.constant 0 : i32
    return %c0_i32, %c0_i32_0 : i32, i32
  }
  func.func @transform_4(%arg0: i32) -> (i32, i32) {
    %c0_i32 = arith.constant 0 : i32
    %c0_i32_0 = arith.constant 0 : i32
    %c0_i32_1 = arith.constant 0 : i32
    return %c0_i32, %c0_i32_0 : i32, i32
  }
  func.func @transform_5(%arg0: i32) -> (i32, i32) {
    %c0_i32 = arith.constant 0 : i32
    %c0_i32_0 = arith.constant 0 : i32
    %c0_i32_1 = arith.constant 0 : i32
    return %c0_i32, %c0_i32_0 : i32, i32
  }
  func.func @transform_6(%arg0: i32) -> (i32, i32) {
    %c0_i32 = arith.constant 0 : i32
    %c0_i32_0 = arith.constant 0 : i32
    return %arg0, %c0_i32 : i32, i32
  }
  func.func @transform_7(%arg0: i32) -> (i32, i32) {
    %c0_i32 = arith.constant 0 : i32
    %c0_i32_0 = arith.constant 0 : i32
    return %arg0, %c0_i32 : i32, i32
  }
  func.func @transform_8(%arg0: i32) -> (i32, i32) {
    %c0_i32 = arith.constant 0 : i32
    %c0_i32_0 = arith.constant 0 : i32
    return %arg0, %c0_i32 : i32, i32
  }
}

</mosaic_0001>

<llo_original>
// kernel: _potential_forward.1
$region0: #{_potential_forward.1}
  #allocation0 [shape = 'u32[]', space=smem, size = 0x4, offset = 0x4, fixed_abs, tag = 'smem constant byte address 0x4 - core index']
  #allocation1 [shape = 'u32[144,128]{1,0:T(1,128)}', space=vmem, size = 0x12000, scoped, tag = 'internal scratch']
  %s0 = inlined_call_operand.vmem [shape: f32[8,16], index: 0, kind: input, shape index: {}]
  %s1 = inlined_call_operand.vmem [shape: f32[1,64], index: 1, kind: input, shape index: {}]
  %s2 = inlined_call_operand.vmem [shape: f32[1,64], index: 2, kind: input, shape index: {}]
  %s3 = inlined_call_operand.vmem [shape: f32[1,16], index: 3, kind: input, shape index: {}]
  %s4 = inlined_call_operand.vmem [shape: f32[1,16], index: 4, kind: input, shape index: {}]
  %s5 = inlined_call_operand.vmem [shape: f32[64,4], index: 5, kind: input, shape index: {}]
  %s6 = inlined_call_operand.vmem [shape: f32[8,4], index: 6, kind: output, shape index: {0}]
  %s7 = inlined_call_operand.hbm [shape: f32[8,16], index: 7, kind: output, shape index: {1}]
  %s8 = inlined_call_operand.vmem [shape: f32[8,64], index: 8, kind: output, shape index: {2}]
  %9 = xla_tuple %s6, %s7, %s8
  %s10 = sld [smem:[#allocation0]]
  $region50: #{_potential_forward.1} parent=0
    _
  %s12 = ssub.s32 1, %s10
  %s13 = scalar_select 0, %s12, %s10
  $region1: #{_potential_forward.1} parent=0
    #allocation2 [shape = 'u8[4096]{0}', space=vmem, size = 0x1000, scoped, tag = 'output window, operand 1, single buffered']
    #allocation3 [shape = 's32[1]{0}', space=sflag, size = 0x4, scoped, tag = 'scoped memory for _potential_forward.1']
    %14 = vsyncpa [#allocation3], 0
    // Predicated region
    $region2: #{_potential_forward.1} parent=1 // pred_check
      _
    $region3: #{_potential_forward.1} parent=1 // pred_check_branch
      %16 = sbr.rel (0) target = $region5
    $region4: #{_potential_forward.1} parent=1 // pred_region
      _
    $region5: #{_potential_forward.1} parent=1 // pred_fallthru
      _
    // Predicated region
    $region6: #{_potential_forward.1} parent=1 // pred_check
      _
    $region7: #{_potential_forward.1} parent=1 // pred_check_branch
      %18 = sbr.rel (0) target = $region9
    $region8: #{_potential_forward.1} parent=1 // pred_region
      _
    $region9: #{_potential_forward.1} parent=1 // pred_fallthru
      _
    // Predicated region
    $region10: #{_potential_forward.1} parent=1 // pred_check
      _
    $region11: #{_potential_forward.1} parent=1 // pred_check_branch
      %20 = sbr.rel (0) target = $region13
    $region12: #{_potential_forward.1} parent=1 // pred_region
      _
    $region13: #{_potential_forward.1} parent=1 // pred_fallthru
      _
    // Predicated region
    $region14: #{_potential_forward.1} parent=1 // pred_check
      _
    $region15: #{_potential_forward.1} parent=1 // pred_check_branch
      %22 = sbr.rel (0) target = $region17
    $region16: #{_potential_forward.1} parent=1 // pred_region
      _
    $region17: #{_potential_forward.1} parent=1 // pred_fallthru
      _
    // Predicated region
    $region18: #{_potential_forward.1} parent=1 // pred_check
      _
    $region19: #{_potential_forward.1} parent=1 // pred_check_branch
      %24 = sbr.rel (0) target = $region21
    $region20: #{_potential_forward.1} parent=1 // pred_region
      _
    $region21: #{_potential_forward.1} parent=1 // pred_fallthru
      _
    // Predicated region
    $region22: #{_potential_forward.1} parent=1 // pred_check
      _
    $region23: #{_potential_forward.1} parent=1 // pred_check_branch
      %26 = sbr.rel (0) target = $region25
    $region24: #{_potential_forward.1} parent=1 // pred_region
      _
    $region25: #{_potential_forward.1} parent=1 // pred_fallthru
      _
    %v27 = vld [vmem:[%s0] sm:$0xff]
    %29 = vrot.lane.b32.xlu0 %v27, 16
    %v30 = vpop.permute.xlu0 %29
    %32 = vrot.lane.b32.xlu0 %v27, 32
    %v33 = vpop.permute.xlu0 %32
    %35 = vrot.lane.b32.xlu0 %v27, 48
    %v36 = vpop.permute.xlu0 %35
    %vm38 = vcmask 130048
    %v39 = vsel %vm38, %v27, %v30
    %vm40 = vcmask 261120
    %v41 = vsel %vm40, %v39, %v33
    %vm42 = vcmask 392192
    %v43 = vsel %vm42, %v41, %v36
    %v44 = vld [vmem:[%s1] sm:$0x1]
    %v46 = vlaneseq
    %v47 = vshrl.u32 %v46, 7
    %v48 = vsub.s32 0, %v47
    %v49 = vrot.slane %v44, %v48
    %v51 = vsub.f32 %v43, %v49
    %v52 = vld [vmem:[%s2] sm:$0x1]
    %v54 = vlaneseq
    %v55 = vshrl.u32 %v54, 7
    %v56 = vsub.s32 0, %v55
    %v57 = vrot.slane %v52, %v56
    %v59 = vmul.f32 %v57, %v51
    %v60 = vsub.f32 0.0, %v59
    %vm61 = vcmask 523264
    %62 = vst.msk [vmem:[%s8] sm:$0xff] %vm61, %v60
    %v63 = vmul.f32 %v51, %v51
    %v64 = vld [vmem:[%s5] sm:$0xff]
    %v65 = vld [vmem:[%s5 + $0x8] sm:$0xff]
    %v66 = vld [vmem:[%s5 + $0x10] sm:$0xff]
    %v67 = vld [vmem:[%s5 + $0x18] sm:$0xff]
    %v68 = vld [vmem:[%s5 + $0x20] sm:$0xff]
    %v69 = vld [vmem:[%s5 + $0x28] sm:$0xff]
    %v70 = vld [vmem:[%s5 + $0x30] sm:$0xff]
    %v71 = vld [vmem:[%s5 + $0x38] sm:$0xff]
    %v73 = vsel %vm61, %v63, 0
    %75 = vmatprep.subr.mxu0 0.0
    %v76 = vand.u32 %v64, 4294901760
    %77 = vmatpush1.msra.mxu0 %v76
    %78 = vmatprep.subr.mxu0 0.0
    %v79 = vand.u32 %v65, 4294901760
    %80 = vmatpush1.msra.mxu0 %v79
    %81 = vmatprep.subr.mxu0 0.0
    %v82 = vand.u32 %v66, 4294901760
    %83 = vmatpush1.msra.mxu0 %v82
    %84 = vmatprep.subr.mxu0 0.0
    %v85 = vand.u32 %v67, 4294901760
    %86 = vmatpush1.msra.mxu0 %v85
    %87 = vmatprep.subr.mxu0 0.0
    %v88 = vand.u32 %v68, 4294901760
    %89 = vmatpush1.msra.mxu0 %v88
    %90 = vmatprep.subr.mxu0 0.0
    %v91 = vand.u32 %v69, 4294901760
    %92 = vmatpush1.msra.mxu0 %v91
    %93 = vmatprep.subr.mxu0 0.0
    %v94 = vand.u32 %v70, 4294901760
    %95 = vmatpush1.msra.mxu0 %v94
    %96 = vmatprep.subr.mxu0 0.0
    %v97 = vand.u32 %v71, 4294901760
    %98 = vmatpush1.msra.mxu0 %v97
    %99 = vmatprep.subr.mxu0 0.0
    %100 = vmatpush1.msra.mxu0 0.0
    %101 = vmatprep.subr.mxu0 0.0
    %102 = vmatpush1.msra.mxu0 0.0
    %103 = vmatprep.subr.mxu0 0.0
    %104 = vmatpush1.msra.mxu0 0.0
    %105 = vmatprep.subr.mxu0 0.0
    %106 = vmatpush1.msra.mxu0 0.0
    %107 = vmatprep.subr.mxu0 0.0
    %108 = vmatpush1.msra.mxu0 0.0
    %109 = vmatprep.subr.mxu0 0.0
    %110 = vmatpush1.msra.mxu0 0.0
    %111 = vmatprep.subr.mxu0 0.0
    %112 = vmatpush1.msra.mxu0 0.0
    %113 = vmatprep.subr.mxu0 0.0
    %114 = vmatpush1.msra.mxu0 0.0
    %115 = vmatprep.subr.mxu0 0.0
    %116 = vmatpush1.msra.mxu0 0.0
    %117 = vmatprep.subr.mxu0 0.0
    %118 = vmatpush1.msra.mxu0 0.0
    %119 = vmatprep.subr.mxu0 0.0
    %120 = vmatpush1.msra.mxu0 0.0
    %121 = vmatprep.subr.mxu0 0.0
    %122 = vmatpush1.msra.mxu0 0.0
    %123 = vmatprep.subr.mxu0 0.0
    %124 = vmatpush1.msra.mxu0 0.0
    %125 = vmatprep.subr.mxu0 0.0
    %126 = vmatpush1.msra.mxu0 0.0
    %127 = vmatprep.subr.mxu0 0.0
    %128 = vmatpush1.msra.mxu0 0.0
    %129 = vmatprep.subr.mxu0 0.0
    %130 = vmatpush1.msra.mxu0 0.0
    %131 = vmatprep.subr.mxu0 0.0
    %132 = vmatpush1.msra.mxu0 0.0
    %133 = vmatprep.subr.mxu0 0.0
    %134 = vmatpush1.msra.mxu0 0.0
    %135 = vmatprep.subr.mxu0 0.0
    %136 = vmatpush1.msra.mxu0 0.0
    %137 = vmatprep.subr.mxu0 0.0
    %138 = vmatpush1.msra.mxu0 0.0
    %139 = vmatprep.subr.mxu0 0.0
    %140 = vmatpush1.msra.mxu0 0.0
    %141 = vmatprep.subr.mxu0 0.0
    %142 = vmatpush1.msra.mxu0 0.0
    %143 = vmatprep.subr.mxu0 0.0
    %144 = vmatpush1.msra.mxu0 0.0
    %145 = vmatprep.subr.mxu0 0.0
    %146 = vmatpush1.msra.mxu0 0.0
    %147 = vmatprep.mubr.f32.mxu0 0.0
    %v148 = vand.u32 %v73, 4294901760
    %v149 = vsub.f32 %v73, %v148
    %v150 = vand.u32 %v149, 4294901760
    %v151 = vsub.f32 %v149, %v150
    %v152 = vand.u32 %v151, 4294901760
    %153 = vmatmul.mubr.f32.gmra.mrb[0].mxu0 %v152
    %v154 = vpop.f32.mrb[0].mxu0
    %v155 = vadd.f32 0.0, %v154
    %v156 = vpop.f32.mrb[0].mxu0
    %157 = vdwg.mxu0
    %158 = vmatprep.subr.mxu0 0.0
    %v159 = vand.u32 %v64, 4294901760
    %v160 = vsub.f32 %v64, %v159
    %v161 = vand.u32 %v160, 4294901760
    %v162 = vsub.f32 %v160, %v161
    %v163 = vand.u32 %v162, 4294901760
    %164 = vmatpush1.msra.mxu0 %v163
    %165 = vmatprep.subr.mxu0 0.0
    %v166 = vand.u32 %v65, 4294901760
    %v167 = vsub.f32 %v65, %v166
    %v168 = vand.u32 %v167, 4294901760
    %v169 = vsub.f32 %v167, %v168
    %v170 = vand.u32 %v169, 4294901760
    %171 = vmatpush1.msra.mxu0 %v170
    %172 = vmatprep.subr.mxu0 0.0
    %v173 = vand.u32 %v66, 4294901760
    %v174 = vsub.f32 %v66, %v173
    %v175 = vand.u32 %v174, 4294901760
    %v176 = vsub.f32 %v174, %v175
    %v177 = vand.u32 %v176, 4294901760
    %178 = vmatpush1.msra.mxu0 %v177
    %179 = vmatprep.subr.mxu0 0.0
    %v180 = vand.u32 %v67, 4294901760
    %v181 = vsub.f32 %v67, %v180
    %v182 = vand.u32 %v181, 4294901760
    %v183 = vsub.f32 %v181, %v182
    %v184 = vand.u32 %v183, 4294901760
    %185 = vmatpush1.msra.mxu0 %v184
    %186 = vmatprep.subr.mxu0 0.0
    %v187 = vand.u32 %v68, 4294901760
    %v188 = vsub.f32 %v68, %v187
    %v189 = vand.u32 %v188, 4294901760
    %v190 = vsub.f32 %v188, %v189
    %v191 = vand.u32 %v190, 4294901760
    %192 = vmatpush1.msra.mxu0 %v191
    %193 = vmatprep.subr.mxu0 0.0
    %v194 = vand.u32 %v69, 4294901760
    %v195 = vsub.f32 %v69, %v194
    %v196 = vand.u32 %v195, 4294901760
    %v197 = vsub.f32 %v195, %v196
    %v198 = vand.u32 %v197, 4294901760
    %199 = vmatpush1.msra.mxu0 %v198
    %200 = vmatprep.subr.mxu0 0.0
    %v201 = vand.u32 %v70, 4294901760
    %v202 = vsub.f32 %v70, %v201
    %v203 = vand.u32 %v202, 4294901760
    %v204 = vsub.f32 %v202, %v203
    %v205 = vand.u32 %v204, 4294901760
    %206 = vmatpush1.msra.mxu0 %v205
    %207 = vmatprep.subr.mxu0 0.0
    %v208 = vand.u32 %v71, 4294901760
    %v209 = vsub.f32 %v71, %v208
    %v210 = vand.u32 %v209, 4294901760
    %v211 = vsub.f32 %v209, %v210
    %v212 = vand.u32 %v211, 4294901760
    %213 = vmatpush1.msra.mxu0 %v212
    %214 = vmatprep.subr.mxu0 0.0
    %215 = vmatpush1.msra.mxu0 0.0
    %216 = vmatprep.subr.mxu0 0.0
    %217 = vmatpush1.msra.mxu0 0.0
    %218 = vmatprep.subr.mxu0 0.0
    %219 = vmatpush1.msra.mxu0 0.0
    %220 = vmatprep.subr.mxu0 0.0
    %221 = vmatpush1.msra.mxu0 0.0
    %222 = vmatprep.subr.mxu0 0.0
    %223 = vmatpush1.msra.mxu0 0.0
    %224 = vmatprep.subr.mxu0 0.0
    %225 = vmatpush1.msra.mxu0 0.0
    %226 = vmatprep.subr.mxu0 0.0
    %227 = vmatpush1.msra.mxu0 0.0
    %228 = vmatprep.subr.mxu0 0.0
    %229 = vmatpush1.msra.mxu0 0.0
    %230 = vmatprep.subr.mxu0 0.0
    %231 = vmatpush1.msra.mxu0 0.0
    %232 = vmatprep.subr.mxu0 0.0
    %233 = vmatpush1.msra.mxu0 0.0
    %234 = vmatprep.subr.mxu0 0.0
    %235 = vmatpush1.msra.mxu0 0.0
    %236 = vmatprep.subr.mxu0 0.0
    %237 = vmatpush1.msra.mxu0 0.0
    %238 = vmatprep.subr.mxu0 0.0
    %239 = vmatpush1.msra.mxu0 0.0
    %240 = vmatprep.subr.mxu0 0.0
    %241 = vmatpush1.msra.mxu0 0.0
    %242 = vmatprep.subr.mxu0 0.0
    %243 = vmatpush1.msra.mxu0 0.0
    %244 = vmatprep.subr.mxu0 0.0
    %245 = vmatpush1.msra.mxu0 0.0
    %246 = vmatprep.subr.mxu0 0.0
    %247 = vmatpush1.msra.mxu0 0.0
    %248 = vmatprep.subr.mxu0 0.0
    %249 = vmatpush1.msra.mxu0 0.0
    %250 = vmatprep.subr.mxu0 0.0
    %251 = vmatpush1.msra.mxu0 0.0
    %252 = vmatprep.subr.mxu0 0.0
    %253 = vmatpush1.msra.mxu0 0.0
    %254 = vmatprep.subr.mxu0 0.0
    %255 = vmatpush1.msra.mxu0 0.0
    %256 = vmatprep.subr.mxu0 0.0
    %257 = vmatpush1.msra.mxu0 0.0
    %258 = vmatprep.subr.mxu0 0.0
    %259 = vmatpush1.msra.mxu0 0.0
    %260 = vmatprep.subr.mxu0 0.0
    %261 = vmatpush1.msra.mxu0 0.0
    %262 = vmatprep.mubr.f32.mxu0 0.0
    %v263 = vand.u32 %v73, 4294901760
    %264 = vmatmul.mubr.f32.gmra.mrb[0].mxu0 %v263
    %v265 = vpop.f32.mrb[0].mxu0
    %v266 = vadd.f32 %v155, %v265
    %v267 = vpop.f32.mrb[0].mxu0
    %268 = vdwg.mxu0
    %269 = vmatprep.subr.mxu0 0.0
    %v270 = vand.u32 %v64, 4294901760
    %v271 = vsub.f32 %v64, %v270
    %272 = vmatpush1.msra.mxu0 %v271
    %273 = vmatprep.subr.mxu0 0.0
    %v274 = vand.u32 %v65, 4294901760
    %v275 = vsub.f32 %v65, %v274
    %276 = vmatpush1.msra.mxu0 %v275
    %277 = vmatprep.subr.mxu0 0.0
    %v278 = vand.u32 %v66, 4294901760
    %v279 = vsub.f32 %v66, %v278
    %280 = vmatpush1.msra.mxu0 %v279
    %281 = vmatprep.subr.mxu0 0.0
    %v282 = vand.u32 %v67, 4294901760
    %v283 = vsub.f32 %v67, %v282
    %284 = vmatpush1.msra.mxu0 %v283
    %285 = vmatprep.subr.mxu0 0.0
    %v286 = vand.u32 %v68, 4294901760
    %v287 = vsub.f32 %v68, %v286
    %288 = vmatpush1.msra.mxu0 %v287
    %289 = vmatprep.subr.mxu0 0.0
    %v290 = vand.u32 %v69, 4294901760
    %v291 = vsub.f32 %v69, %v290
    %292 = vmatpush1.msra.mxu0 %v291
    %293 = vmatprep.subr.mxu0 0.0
    %v294 = vand.u32 %v70, 4294901760
    %v295 = vsub.f32 %v70, %v294
    %296 = vmatpush1.msra.mxu0 %v295
    %297 = vmatprep.subr.mxu0 0.0
    %v298 = vand.u32 %v71, 4294901760
    %v299 = vsub.f32 %v71, %v298
    %300 = vmatpush1.msra.mxu0 %v299
    %301 = vmatprep.subr.mxu0 0.0
    %302 = vmatpush1.msra.mxu0 0.0
    %303 = vmatprep.subr.mxu0 0.0
    %304 = vmatpush1.msra.mxu0 0.0
    %305 = vmatprep.subr.mxu0 0.0
    %306 = vmatpush1.msra.mxu0 0.0
    %307 = vmatprep.subr.mxu0 0.0
    %308 = vmatpush1.msra.mxu0 0.0
    %309 = vmatprep.subr.mxu0 0.0
    %310 = vmatpush1.msra.mxu0 0.0
    %311 = vmatprep.subr.mxu0 0.0
    %312 = vmatpush1.msra.mxu0 0.0
    %313 = vmatprep.subr.mxu0 0.0
    %314 = vmatpush1.msra.mxu0 0.0
    %315 = vmatprep.subr.mxu0 0.0
    %316 = vmatpush1.msra.mxu0 0.0
    %317 = vmatprep.subr.mxu0 0.0
    %318 = vmatpush1.msra.mxu0 0.0
    %319 = vmatprep.subr.mxu0 0.0
    %320 = vmatpush1.msra.mxu0 0.0
    %321 = vmatprep.subr.mxu0 0.0
    %322 = vmatpush1.msra.mxu0 0.0
    %323 = vmatprep.subr.mxu0 0.0
    %324 = vmatpush1.msra.mxu0 0.0
    %325 = vmatprep.subr.mxu0 0.0
    %326 = vmatpush1.msra.mxu0 0.0
    %327 = vmatprep.subr.mxu0 0.0
    %328 = vmatpush1.msra.mxu0 0.0
    %329 = vmatprep.subr.mxu0 0.0
    %330 = vmatpush1.msra.mxu0 0.0
    %331 = vmatprep.subr.mxu0 0.0
    %332 = vmatpush1.msra.mxu0 0.0
    %333 = vmatprep.subr.mxu0 0.0
    %334 = vmatpush1.msra.mxu0 0.0
    %335 = vmatprep.subr.mxu0 0.0
    %336 = vmatpush1.msra.mxu0 0.0
    %337 = vmatprep.subr.mxu0 0.0
    %338 = vmatpush1.msra.mxu0 0.0
    %339 = vmatprep.subr.mxu0 0.0
    %340 = vmatpush1.msra.mxu0 0.0
    %341 = vmatprep.subr.mxu0 0.0
    %342 = vmatpush1.msra.mxu0 0.0
    %343 = vmatprep.subr.mxu0 0.0
    %344 = vmatpush1.msra.mxu0 0.0
    %345 = vmatprep.subr.mxu0 0.0
    %346 = vmatpush1.msra.mxu0 0.0
    %347 = vmatprep.subr.mxu0 0.0
    %348 = vmatpush1.msra.mxu0 0.0
    %349 = vmatprep.mubr.f32.mxu0 0.0
    %v350 = vand.u32 %v73, 4294901760
    %v351 = vsub.f32 %v73, %v350
    %352 = vmatmul.mubr.f32.gmra.mrb[0].mxu0 %v351
    %v353 = vpop.f32.mrb[0].mxu0
    %v354 = vadd.f32 %v266, %v353
    %v355 = vpop.f32.mrb[0].mxu0
    %356 = vdwg.mxu0
    %357 = vmatprep.subr.mxu0 0.0
    %v358 = vand.u32 %v64, 4294901760
    %359 = vmatpush1.msra.mxu0 %v358
    %360 = vmatprep.subr.mxu0 0.0
    %v361 = vand.u32 %v65, 4294901760
    %362 = vmatpush1.msra.mxu0 %v361
    %363 = vmatprep.subr.mxu0 0.0
    %v364 = vand.u32 %v66, 4294901760
    %365 = vmatpush1.msra.mxu0 %v364
    %366 = vmatprep.subr.mxu0 0.0
    %v367 = vand.u32 %v67, 4294901760
    %368 = vmatpush1.msra.mxu0 %v367
    %369 = vmatprep.subr.mxu0 0.0
    %v370 = vand.u32 %v68, 4294901760
    %371 = vmatpush1.msra.mxu0 %v370
    %372 = vmatprep.subr.mxu0 0.0
    %v373 = vand.u32 %v69, 4294901760
    %374 = vmatpush1.msra.mxu0 %v373
    %375 = vmatprep.subr.mxu0 0.0
    %v376 = vand.u32 %v70, 4294901760
    %377 = vmatpush1.msra.mxu0 %v376
    %378 = vmatprep.subr.mxu0 0.0
    %v379 = vand.u32 %v71, 4294901760
    %380 = vmatpush1.msra.mxu0 %v379
    %381 = vmatprep.subr.mxu0 0.0
    %382 = vmatpush1.msra.mxu0 0.0
    %383 = vmatprep.subr.mxu0 0.0
    %384 = vmatpush1.msra.mxu0 0.0
    %385 = vmatprep.subr.mxu0 0.0
    %386 = vmatpush1.msra.mxu0 0.0
    %387 = vmatprep.subr.mxu0 0.0
    %388 = vmatpush1.msra.mxu0 0.0
    %389 = vmatprep.subr.mxu0 0.0
    %390 = vmatpush1.msra.mxu0 0.0
    %391 = vmatprep.subr.mxu0 0.0
    %392 = vmatpush1.msra.mxu0 0.0
    %393 = vmatprep.subr.mxu0 0.0
    %394 = vmatpush1.msra.mxu0 0.0
    %395 = vmatprep.subr.mxu0 0.0
    %396 = vmatpush1.msra.mxu0 0.0
    %397 = vmatprep.subr.mxu0 0.0
    %398 = vmatpush1.msra.mxu0 0.0
    %399 = vmatprep.subr.mxu0 0.0
    %400 = vmatpush1.msra.mxu0 0.0
    %401 = vmatprep.subr.mxu0 0.0
    %402 = vmatpush1.msra.mxu0 0.0
    %403 = vmatprep.subr.mxu0 0.0
    %404 = vmatpush1.msra.mxu0 0.0
    %405 = vmatprep.subr.mxu0 0.0
    %406 = vmatpush1.msra.mxu0 0.0
    %407 = vmatprep.subr.mxu0 0.0
    %408 = vmatpush1.msra.mxu0 0.0
    %409 = vmatprep.subr.mxu0 0.0
    %410 = vmatpush1.msra.mxu0 0.0
    %411 = vmatprep.subr.mxu0 0.0
    %412 = vmatpush1.msra.mxu0 0.0
    %413 = vmatprep.subr.mxu0 0.0
    %414 = vmatpush1.msra.mxu0 0.0
    %415 = vmatprep.subr.mxu0 0.0
    %416 = vmatpush1.msra.mxu0 0.0
    %417 = vmatprep.subr.mxu0 0.0
    %418 = vmatpush1.msra.mxu0 0.0
    %419 = vmatprep.subr.mxu0 0.0
    %420 = vmatpush1.msra.mxu0 0.0
    %421 = vmatprep.subr.mxu0 0.0
    %422 = vmatpush1.msra.mxu0 0.0
    %423 = vmatprep.subr.mxu0 0.0
    %424 = vmatpush1.msra.mxu0 0.0
    %425 = vmatprep.subr.mxu0 0.0
    %426 = vmatpush1.msra.mxu0 0.0
    %427 = vmatprep.subr.mxu0 0.0
    %428 = vmatpush1.msra.mxu0 0.0
    %429 = vmatprep.mubr.f32.mxu0 0.0
    %v430 = vand.u32 %v73, 4294901760
    %v431 = vsub.f32 %v73, %v430
    %v432 = vand.u32 %v431, 4294901760
    %433 = vmatmul.mubr.f32.gmra.mrb[0].mxu0 %v432
    %v434 = vpop.f32.mrb[0].mxu0
    %v435 = vadd.f32 %v354, %v434
    %v436 = vpop.f32.mrb[0].mxu0
    %437 = vdwg.mxu0
    %438 = vmatprep.subr.mxu0 0.0
    %v439 = vand.u32 %v64, 4294901760
    %v440 = vsub.f32 %v64, %v439
    %v441 = vand.u32 %v440, 4294901760
    %442 = vmatpush1.msra.mxu0 %v441
    %443 = vmatprep.subr.mxu0 0.0
    %v444 = vand.u32 %v65, 4294901760
    %v445 = vsub.f32 %v65, %v444
    %v446 = vand.u32 %v445, 4294901760
    %447 = vmatpush1.msra.mxu0 %v446
    %448 = vmatprep.subr.mxu0 0.0
    %v449 = vand.u32 %v66, 4294901760
    %v450 = vsub.f32 %v66, %v449
    %v451 = vand.u32 %v450, 4294901760
    %452 = vmatpush1.msra.mxu0 %v451
    %453 = vmatprep.subr.mxu0 0.0
    %v454 = vand.u32 %v67, 4294901760
    %v455 = vsub.f32 %v67, %v454
    %v456 = vand.u32 %v455, 4294901760
    %457 = vmatpush1.msra.mxu0 %v456
    %458 = vmatprep.subr.mxu0 0.0
    %v459 = vand.u32 %v68, 4294901760
    %v460 = vsub.f32 %v68, %v459
    %v461 = vand.u32 %v460, 4294901760
    %462 = vmatpush1.msra.mxu0 %v461
    %463 = vmatprep.subr.mxu0 0.0
    %v464 = vand.u32 %v69, 4294901760
    %v465 = vsub.f32 %v69, %v464
    %v466 = vand.u32 %v465, 4294901760
    %467 = vmatpush1.msra.mxu0 %v466
    %468 = vmatprep.subr.mxu0 0.0
    %v469 = vand.u32 %v70, 4294901760
    %v470 = vsub.f32 %v70, %v469
    %v471 = vand.u32 %v470, 4294901760
    %472 = vmatpush1.msra.mxu0 %v471
    %473 = vmatprep.subr.mxu0 0.0
    %v474 = vand.u32 %v71, 4294901760
    %v475 = vsub.f32 %v71, %v474
    %v476 = vand.u32 %v475, 4294901760
    %477 = vmatpush1.msra.mxu0 %v476
    %478 = vmatprep.subr.mxu0 0.0
    %479 = vmatpush1.msra.mxu0 0.0
    %480 = vmatprep.subr.mxu0 0.0
    %481 = vmatpush1.msra.mxu0 0.0
    %482 = vmatprep.subr.mxu0 0.0
    %483 = vmatpush1.msra.mxu0 0.0
    %484 = vmatprep.subr.mxu0 0.0
    %485 = vmatpush1.msra.mxu0 0.0
    %486 = vmatprep.subr.mxu0 0.0
    %487 = vmatpush1.msra.mxu0 0.0
    %488 = vmatprep.subr.mxu0 0.0
    %489 = vmatpush1.msra.mxu0 0.0
    %490 = vmatprep.subr.mxu0 0.0
    %491 = vmatpush1.msra.mxu0 0.0
    %492 = vmatprep.subr.mxu0 0.0
    %493 = vmatpush1.msra.mxu0 0.0
    %494 = vmatprep.subr.mxu0 0.0
    %495 = vmatpush1.msra.mxu0 0.0
    %496 = vmatprep.subr.mxu0 0.0
    %497 = vmatpush1.msra.mxu0 0.0
    %498 = vmatprep.subr.mxu0 0.0
    %499 = vmatpush1.msra.mxu0 0.0
    %500 = vmatprep.subr.mxu0 0.0
    %501 = vmatpush1.msra.mxu0 0.0
    %502 = vmatprep.subr.mxu0 0.0
    %503 = vmatpush1.msra.mxu0 0.0
    %504 = vmatprep.subr.mxu0 0.0
    %505 = vmatpush1.msra.mxu0 0.0
    %506 = vmatprep.subr.mxu0 0.0
    %507 = vmatpush1.msra.mxu0 0.0
    %508 = vmatprep.subr.mxu0 0.0
    %509 = vmatpush1.msra.mxu0 0.0
    %510 = vmatprep.subr.mxu0 0.0
    %511 = vmatpush1.msra.mxu0 0.0
    %512 = vmatprep.subr.mxu0 0.0
    %513 = vmatpush1.msra.mxu0 0.0
    %514 = vmatprep.subr.mxu0 0.0
    %515 = vmatpush1.msra.mxu0 0.0
    %516 = vmatprep.subr.mxu0 0.0
    %517 = vmatpush1.msra.mxu0 0.0
    %518 = vmatprep.subr.mxu0 0.0
    %519 = vmatpush1.msra.mxu0 0.0
    %520 = vmatprep.subr.mxu0 0.0
    %521 = vmatpush1.msra.mxu0 0.0
    %522 = vmatprep.subr.mxu0 0.0
    %523 = vmatpush1.msra.mxu0 0.0
    %524 = vmatprep.subr.mxu0 0.0
    %525 = vmatpush1.msra.mxu0 0.0
    %526 = vmatprep.mubr.f32.mxu0 0.0
    %v527 = vand.u32 %v73, 4294901760
    %528 = vmatmul.mubr.f32.gmra.mrb[0].mxu0 %v527
    %v529 = vpop.f32.mrb[0].mxu0
    %v530 = vadd.f32 %v435, %v529
    %v531 = vpop.f32.mrb[0].mxu0
    %532 = vdwg.mxu0
    %533 = vmatprep.subr.mxu0 0.0
    %v534 = vand.u32 %v64, 4294901760
    %535 = vmatpush1.msra.mxu0 %v534
    %536 = vmatprep.subr.mxu0 0.0
    %v537 = vand.u32 %v65, 4294901760
    %538 = vmatpush1.msra.mxu0 %v537
    %539 = vmatprep.subr.mxu0 0.0
    %v540 = vand.u32 %v66, 4294901760
    %541 = vmatpush1.msra.mxu0 %v540
    %542 = vmatprep.subr.mxu0 0.0
    %v543 = vand.u32 %v67, 4294901760
    %544 = vmatpush1.msra.mxu0 %v543
    %545 = vmatprep.subr.mxu0 0.0
    %v546 = vand.u32 %v68, 4294901760
    %547 = vmatpush1.msra.mxu0 %v546
    %548 = vmatprep.subr.mxu0 0.0
    %v549 = vand.u32 %v69, 4294901760
    %550 = vmatpush1.msra.mxu0 %v549
    %551 = vmatprep.subr.mxu0 0.0
    %v552 = vand.u32 %v70, 4294901760
    %553 = vmatpush1.msra.mxu0 %v552
    %554 = vmatprep.subr.mxu0 0.0
    %v555 = vand.u32 %v71, 4294901760
    %556 = vmatpush1.msra.mxu0 %v555
    %557 = vmatprep.subr.mxu0 0.0
    %558 = vmatpush1.msra.mxu0 0.0
    %559 = vmatprep.subr.mxu0 0.0
    %560 = vmatpush1.msra.mxu0 0.0
    %561 = vmatprep.subr.mxu0 0.0
    %562 = vmatpush1.msra.mxu0 0.0
    %563 = vmatprep.subr.mxu0 0.0
    %564 = vmatpush1.msra.mxu0 0.0
    %565 = vmatprep.subr.mxu0 0.0
    %566 = vmatpush1.msra.mxu0 0.0
    %567 = vmatprep.subr.mxu0 0.0
    %568 = vmatpush1.msra.mxu0 0.0
    %569 = vmatprep.subr.mxu0 0.0
    %570 = vmatpush1.msra.mxu0 0.0
    %571 = vmatprep.subr.mxu0 0.0
    %572 = vmatpush1.msra.mxu0 0.0
    %573 = vmatprep.subr.mxu0 0.0
    %574 = vmatpush1.msra.mxu0 0.0
    %575 = vmatprep.subr.mxu0 0.0
    %576 = vmatpush1.msra.mxu0 0.0
    %577 = vmatprep.subr.mxu0 0.0
    %578 = vmatpush1.msra.mxu0 0.0
    %579 = vmatprep.subr.mxu0 0.0
    %580 = vmatpush1.msra.mxu0 0.0
    %581 = vmatprep.subr.mxu0 0.0
    %582 = vmatpush1.msra.mxu0 0.0
    %583 = vmatprep.subr.mxu0 0.0
    %584 = vmatpush1.msra.mxu0 0.0
    %585 = vmatprep.subr.mxu0 0.0
    %586 = vmatpush1.msra.mxu0 0.0
    %587 = vmatprep.subr.mxu0 0.0
    %588 = vmatpush1.msra.mxu0 0.0
    %589 = vmatprep.subr.mxu0 0.0
    %590 = vmatpush1.msra.mxu0 0.0
    %591 = vmatprep.subr.mxu0 0.0
    %592 = vmatpush1.msra.mxu0 0.0
    %593 = vmatprep.subr.mxu0 0.0
    %594 = vmatpush1.msra.mxu0 0.0
    %595 = vmatprep.subr.mxu0 0.0
    %596 = vmatpush1.msra.mxu0 0.0
    %597 = vmatprep.subr.mxu0 0.0
    %598 = vmatpush1.msra.mxu0 0.0
    %599 = vmatprep.subr.mxu0 0.0
    %600 = vmatpush1.msra.mxu0 0.0
    %601 = vmatprep.subr.mxu0 0.0
    %602 = vmatpush1.msra.mxu0 0.0
    %603 = vmatprep.subr.mxu0 0.0
    %604 = vmatpush1.msra.mxu0 0.0
    %605 = vmatprep.mubr.f32.mxu0 0.0
    %v606 = vand.u32 %v73, 4294901760
    %607 = vmatmul.mubr.f32.gmra.mrb[0].mxu0 %v606
    %v608 = vpop.f32.mrb[0].mxu0
    %v609 = vadd.f32 %v530, %v608
    %v610 = vpop.f32.mrb[0].mxu0
    %611 = vdwg.mxu0
    %vm612 = vcmask 31744
    %613 = vst.msk [vmem:[%s6] sm:$0xff] %vm612, %v609
    %v614 = vld [vmem:[%s3] sm:$0x1]
    %v616 = vlaneseq
    %v617 = vshrl.u32 %v616, 7
    %v618 = vsub.s32 0, %v617
    %v619 = vrot.slane %v614, %v618
    %v621 = vmul.f32 %v619, %v27
    %v622 = vld [vmem:[%s4] sm:$0x1]
    %v624 = vlaneseq
    %v625 = vshrl.u32 %v624, 7
    %v626 = vsub.s32 0, %v625
    %v627 = vrot.slane %v622, %v626
    %v629 = vadd.f32 %v621, %v627
    %630 = vst.msk [vmem:[#allocation2] sm:$0xff] %vm38, %v629
    // Predicated region
    $region26: #{_potential_forward.1} parent=1 // pred_check
      _
    $region27: #{_potential_forward.1} parent=1 // pred_check_branch
      %632 = sbr.rel (0) target = $region29
    $region28: #{_potential_forward.1} parent=1 // pred_region
      _
    $region29: #{_potential_forward.1} parent=1 // pred_fallthru
      _
    // Predicated region
    $region30: #{_potential_forward.1} parent=1 // pred_check
      _
    $region31: #{_potential_forward.1} parent=1 // pred_check_branch
      %634 = sbr.rel (0) target = $region33
    $region32: #{_potential_forward.1} parent=1 // pred_region
      %s636 = ssub.s32 128, 128
      %637 = vsyncadd [#allocation3], %s636
      %s639 = sshll.u32 [#allocation2], 4
      %s640 = int_to_ptr.vmem [resolvable:$true] %s639
      %642 = dma.vmem_to_hbm [thread:$0]  %s640, 128, %s7, [#allocation3]
    $region33: #{_potential_forward.1} parent=1 // pred_fallthru
      _
    // Predicated region
    $region34: #{_potential_forward.1} parent=1 // pred_check
      _
    $region35: #{_potential_forward.1} parent=1 // pred_check_branch
      %644 = sbr.rel (0) target = $region37
    $region36: #{_potential_forward.1} parent=1 // pred_region
      _
    $region37: #{_potential_forward.1} parent=1 // pred_fallthru
      _
    // Predicated region
    $region38: #{_potential_forward.1} parent=1 // pred_check
      _
    $region39: #{_potential_forward.1} parent=1 // pred_check_branch
      %646 = sbr.rel (0) target = $region41
    $region40: #{_potential_forward.1} parent=1 // pred_region
      _
    $region41: #{_potential_forward.1} parent=1 // pred_fallthru
      _
    // Predicated region
    $region42: #{_potential_forward.1} parent=1 // pred_check
      _
    $region43: #{_potential_forward.1} parent=1 // pred_check_branch
      %648 = sbr.rel (0) target = $region45
    $region44: #{_potential_forward.1} parent=1 // pred_region
      %649 = dma.done [#allocation3], 128
    $region45: #{_potential_forward.1} parent=1 // pred_fallthru
      _
    // Predicated region
    $region46: #{_potential_forward.1} parent=1 // pred_check
      _
    $region47: #{_potential_forward.1} parent=1 // pred_check_branch
      %651 = sbr.rel (0) target = $region49
    $region48: #{_potential_forward.1} parent=1 // pred_region
      _
    $region49: #{_potential_forward.1} parent=1 // pred_fallthru
      _
    %652 = vsyncpa [#allocation3], 1

</llo_original>
